<compile_context>
chip_gen: v6e
topology: v6e:2x2x1
jax: 0.10.0
libtpu: 0.0.40
codegen_flags: <defaults>
</compile_context>

<pallas_src>
import functools

import jax
import jax.numpy as jnp
from jax import lax
from jax.experimental import pallas as pl
from jax.experimental.pallas import tpu as pltpu

BN_EPS = 1e-5
_INV_SQRT2 = 0.7071067811865476
_HI = jax.lax.Precision.HIGHEST


def _erf(x):
    # Abramowitz & Stegun 7.1.26 (max abs error ~1.5e-7); VPU/EUP ops only.
    a1, a2, a3, a4, a5 = 0.254829592, -0.284496736, 1.421413741, -1.453152027, 1.061405429
    p = 0.3275911
    s = jnp.sign(x)
    z = jnp.abs(x)
    t = 1.0 / (1.0 + p * z)
    poly = t * (a1 + t * (a2 + t * (a3 + t * (a4 + t * a5))))
    return s * (1.0 - poly * jnp.exp(-z * z))


def _gelu_exact(x):
    # matches torch.nn.GELU() (approximate='none')
    return 0.5 * x * (1.0 + _erf(x * _INV_SQRT2))


def _exclusive_valid_count(valid_f):
    """Exclusive prefix sum of a 0/1 mask along the last (lane) axis.

    Hillis-Steele log-step scan built from static slices + concatenates
    (guaranteed Mosaic lowering). Replaces the previous NxN strict-lower
    triangular matmul (O(N^2) VMEM + MXU work -> O(N log N) vector work).
    """
    M, N = valid_f.shape
    s = valid_f
    d = 1
    while d < N:
        shifted = jnp.concatenate(
            [jnp.zeros((M, d), valid_f.dtype), s[:, :N - d]], axis=-1)
        s = s + shifted
        d *= 2
    return s - valid_f   # exclusive count of valid neighbors to the left


def _matmul3(x, w):
    # [R, 3] @ [3, C] as exact-f32 VPU broadcast FMA (avoids a K=3 MXU pass).
    return x[:, 0:1] * w[0:1, :] + x[:, 1:2] * w[1:2, :] + x[:, 2:3] * w[2:3, :]


def _stage1_kernel(centroid_ref, xyz_ref, radius_ref, dist_ref,
                   w0g_ref, w0p_ref, b0_ref, h0_ref, *, k):
    """Per-batch grouping + fused Conv2d(9 -> C//8). Grid axis = batch (parallel)."""
    M = centroid_ref.shape[1]
    N = xyz_ref.shape[1]
    C8 = w0g_ref.shape[1]

    centroid = centroid_ref[0]            # [M, 3]
    xyz = xyz_ref[0]                      # [N, 3]
    radius = radius_ref[0]                # [M, 1]
    dist = dist_ref[0]                    # [M, N]

    valid = dist <= radius                # torch keeps dist <= radius
    valid_f = valid.astype(jnp.float32)

    rank_i = _exclusive_valid_count(valid_f).astype(jnp.int32)            # [M, N]
    nvalid = jnp.sum(valid_f, axis=-1, keepdims=True).astype(jnp.int32)   # [M, 1]

    # one-hot selection S[m, j, i]: neighbor slot j takes the j-th valid index,
    # slots past the last valid index repeat the first valid one.
    j_iota = lax.broadcasted_iota(jnp.int32, (M, k, N), 1)
    rank_b = rank_i[:, None, :]
    sel = valid[:, None, :] & (
        (rank_b == j_iota)
        | ((j_iota >= nvalid[:, :, None]) & (rank_b == 0)))               # [M, k, N]
    # exact 0/1 -> bf16 operand for the MXU (halves VMEM, 2x MXU throughput)
    sel_b = sel.astype(jnp.float32).reshape(M * k, N).astype(jnp.bfloat16)

    # Fused stage 1: feat9 @ w0 + b0 == grouped@(w0_g+w0_v) + points@(w0_p-w0_v) + b0
    xvw = _matmul3(xyz, w0g_ref[...])                                     # [N, C8] f32
    cpw = _matmul3(centroid, w0p_ref[...]) + b0_ref[...]                  # [M, C8] f32

    gathered = jnp.dot(sel_b, xvw.astype(jnp.bfloat16),
                       preferred_element_type=jnp.float32)                # [M*k, C8]

    h0 = gathered.reshape(M, k, C8) + cpw[:, None, :]
    h0_ref[0] = h0.reshape(M * k, C8)


def _mlp_head_kernel(h0_ref, w1_ref, w2_ref, out_ref, *, B, M, k, C, Cpad):
    """BN2d+GELU, max over k, Conv1x1(C/8->C/4)+BN+GELU, Conv1x1(C/4->C)+BN."""
    C8 = h0_ref.shape[-1]

    h0 = h0_ref[...].reshape(B * M * k, C8)

    # BatchNorm2d over (B, M, k) per channel (train mode, biased variance), GELU.
    cnt0 = float(B * M * k)
    mean0 = jnp.sum(h0, axis=0, keepdims=True) / cnt0
    var0 = jnp.sum(h0 * h0, axis=0, keepdims=True) / cnt0 - mean0 * mean0
    h0n = _gelu_exact((h0 - mean0) * lax.rsqrt(var0 + BN_EPS))

    pooled = jnp.max(h0n.reshape(B * M, k, C8), axis=1)                   # [B*M, C8]

    # Conv1x1(C//8 -> C//4) + BatchNorm1d + GELU (one stacked dot for all B*M rows)
    h1 = jnp.dot(pooled, w1_ref[...], precision=_HI,
                 preferred_element_type=jnp.float32)
    cnt1 = float(B * M)
    mean1 = jnp.sum(h1, axis=0, keepdims=True) / cnt1
    var1 = jnp.sum(h1 * h1, axis=0, keepdims=True) / cnt1 - mean1 * mean1
    h1n = _gelu_exact((h1 - mean1) * lax.rsqrt(var1 + BN_EPS))

    # Conv1x1(C//4 -> C) + BatchNorm1d (no activation)
    h2 = jnp.dot(h1n, w2_ref[...], precision=_HI,
                 preferred_element_type=jnp.float32)
    mean2 = jnp.sum(h2, axis=0, keepdims=True) / cnt1
    var2 = jnp.sum(h2 * h2, axis=0, keepdims=True) / cnt1 - mean2 * mean2
    h2n = (h2 - mean2) * lax.rsqrt(var2 + BN_EPS)

    # lane-dense output store: pad channels to a multiple of 128 (wrapper slices back)
    if Cpad > C:
        h2n = jnp.concatenate(
            [h2n, jnp.zeros((B * M, Cpad - C), jnp.float32)], axis=-1)
    out_ref[...] = h2n.reshape(B, M, Cpad)


def position_encoder(centroid, xyz, radius, dist, w0, b0, w1, w2, *, k):
    B, M, _ = centroid.shape
    N = xyz.shape[1]
    C8 = w0.shape[1]
    C = w2.shape[1]
    Cpad = ((C + 127) // 128) * 128

    # one-time weight folding for the fused stage-1 conv
    w0g = w0[3:6] + w0[6:9]   # acts on grouped neighbor coords
    w0p = w0[0:3] - w0[6:9]   # acts on the (broadcast) centroid coords

    stage1 = pl.pallas_call(
        functools.partial(_stage1_kernel, k=k),
        grid=(B,),
        in_specs=[
            pl.BlockSpec((1, M, 3), lambda b: (b, 0, 0)),
            pl.BlockSpec((1, N, 3), lambda b: (b, 0, 0)),
            pl.BlockSpec((1, M, 1), lambda b: (b, 0, 0)),
            pl.BlockSpec((1, M, N), lambda b: (b, 0, 0)),
            pl.BlockSpec((3, C8), lambda b: (0, 0)),
            pl.BlockSpec((3, C8), lambda b: (0, 0)),
            pl.BlockSpec((1, C8), lambda b: (0, 0)),
        ],
        out_specs=pl.BlockSpec((1, M * k, C8), lambda b: (b, 0, 0)),
        out_shape=jax.ShapeDtypeStruct((B, M * k, C8), jnp.float32),
        compiler_params=pltpu.CompilerParams(
            dimension_semantics=("parallel",),
            vmem_limit_bytes=32 * 1024 * 1024),
    )
    h0_raw = stage1(centroid, xyz, radius, dist, w0g, w0p, b0)

    vmem = pl.BlockSpec(memory_space=pltpu.MemorySpace.VMEM)
    head = pl.pallas_call(
        functools.partial(_mlp_head_kernel, B=B, M=M, k=k, C=C, Cpad=Cpad),
        in_specs=[vmem, vmem, vmem],
        out_specs=vmem,
        out_shape=jax.ShapeDtypeStruct((B, M, Cpad), jnp.float32),
        compiler_params=pltpu.CompilerParams(
            vmem_limit_bytes=32 * 1024 * 1024),
    )
    out = head(h0_raw, w1, w2)
    return out[..., :C]


def reference_forward(centroid, xyz, radius, dist, w0, b0, w1, w2, k):
    """Pure-JAX reference mirroring the PyTorch forward (train-mode BN, exact GELU)."""
    B, M, _ = centroid.shape
    N = xyz.shape[1]
    hi = jax.lax.Precision.HIGHEST

    idx = jnp.broadcast_to(jnp.arange(N, dtype=jnp.int32)[None, None, :], (B, M, N))
    idx = jnp.where(dist > radius, N, idx)
    idx = jnp.sort(idx, axis=-1)[:, :, :k]
    first = idx[:, :, :1]
    idx = jnp.where(idx == N, first, idx)
    grouped = jax.vmap(lambda pts, i: pts[i])(xyz, idx)                 # [B, M, k, 3]

    points = jnp.broadcast_to(centroid[:, :, None, :], (B, M, k, 3))
    variance = grouped - points
    feat9 = jnp.concatenate([points, grouped, variance], axis=-1)       # [B, M, k, 9]

    h0 = jnp.einsum("bmkc,co->bmko", feat9, w0, precision=hi) + b0[0]
    m0 = h0.mean(axis=(0, 1, 2))
    v0 = ((h0 - m0) ** 2).mean(axis=(0, 1, 2))
    h0 = jax.nn.gelu((h0 - m0) / jnp.sqrt(v0 + BN_EPS), approximate=False)
    pooled = h0.max(axis=2)                                             # [B, M, C8]

    h1 = jnp.einsum("bmc,co->bmo", pooled, w1, precision=hi)
    m1 = h1.mean(axis=(0, 1))
    v1 = ((h1 - m1) ** 2).mean(axis=(0, 1))
    h1 = jax.nn.gelu((h1 - m1) / jnp.sqrt(v1 + BN_EPS), approximate=False)

    h2 = jnp.einsum("bmc,co->bmo", h1, w2, precision=hi)
    m2 = h2.mean(axis=(0, 1))
    v2 = ((h2 - m2) ** 2).mean(axis=(0, 1))
    return (h2 - m2) / jnp.sqrt(v2 + BN_EPS)


if __name__ == "__main__":
    B, N, M, k = 2, 16, 8, 4
    C = 32                      # out_channel; C//8 = 4, C//4 = 8
    C8, C4 = C // 8, C // 4

    key = jax.random.PRNGKey(0)
    k_xyz, k_w0, k_b0, k_w1, k_w2 = jax.random.split(key, 5)

    xyz = jax.random.normal(k_xyz, (B, N, 3), dtype=jnp.float32)
    centroid = xyz[:, :M, :]    # centroids are a subset of xyz -> each has >=1 in-radius neighbor
    dist = jnp.sqrt(jnp.sum((centroid[:, :, None, :] - xyz[:, None, :, :]) ** 2, axis=-1))
    radius = jnp.full((B, M, 1), 1.5, dtype=jnp.float32)

    # deterministic synthetic parameters (shapes from the module __init__)
    w0 = 0.2 * jax.random.normal(k_w0, (9, C8), dtype=jnp.float32)    # Conv2d(9, C//8, 1) weight^T
    b0 = 0.1 * jax.random.normal(k_b0, (1, C8), dtype=jnp.float32)    # Conv2d bias
    w1 = 0.2 * jax.random.normal(k_w1, (C8, C4), dtype=jnp.float32)   # Conv1x1(C//8, C//4), no bias
    w2 = 0.2 * jax.random.normal(k_w2, (C4, C), dtype=jnp.float32)    # Conv1x1(C//4, C), no bias

    out = position_encoder(centroid, xyz, radius, dist, w0, b0, w1, w2, k=k)
    out = jax.block_until_ready(out)
    assert out.shape == (B, M, C)

    ref = reference_forward(centroid, xyz, radius, dist, w0, b0, w1, w2, k)
    err = float(jnp.abs(out - ref).max())
    # Tolerance reflects the intentional bf16-operand MXU path for the one-hot
    # gather (per perf guidance); all other math is f32 / HIGHEST precision.
    assert jnp.allclose(out, ref, atol=2e-2, rtol=2e-2), err

    print("KERNEL_OK")
</pallas_src>

<mosaic_0001>
module attributes {stable_mosaic.version = 11 : i64} {
  func.func @_stage1_kernel(%arg0: i32, %arg1: memref<1x8x3xf32, #tpu.memory_space<vmem>>, %arg2: memref<1x16x3xf32, #tpu.memory_space<vmem>>, %arg3: memref<1x8x1xf32, #tpu.memory_space<vmem>>, %arg4: memref<1x8x16xf32, #tpu.memory_space<vmem>>, %arg5: memref<3x4xf32, #tpu.memory_space<vmem>>, %arg6: memref<3x4xf32, #tpu.memory_space<vmem>>, %arg7: memref<1x4xf32, #tpu.memory_space<vmem>>, %arg8: memref<1x32x4xf32, #tpu.memory_space<vmem>>) attributes {dimension_semantics = [#tpu.dimension_semantics<parallel>], iteration_bounds = array<i64: 2>, scalar_prefetch = 0 : i64, scratch_operands = 0 : i64, tpu.core_type = #tpu.core_type<tc>, window_params = [{transform_indices = @transform_0, window_bounds = array<i64: 1, 8, 3>}, {transform_indices = @transform_1, window_bounds = array<i64: 1, 16, 3>}, {transform_indices = @transform_2, window_bounds = array<i64: 1, 8, 1>}, {transform_indices = @transform_3, window_bounds = array<i64: 1, 8, 16>}, {pipeline_mode = #tpu.pipeline_mode<synchronous>, transform_indices = @transform_4, window_bounds = array<i64: 3, 4>}, {pipeline_mode = #tpu.pipeline_mode<synchronous>, transform_indices = @transform_5, window_bounds = array<i64: 3, 4>}, {pipeline_mode = #tpu.pipeline_mode<synchronous>, transform_indices = @transform_6, window_bounds = array<i64: 1, 4>}, {transform_indices = @transform_7, window_bounds = array<i64: 1, 32, 4>}]} {
    %c0 = arith.constant 0 : index
    %c0_0 = arith.constant 0 : index
    %c0_1 = arith.constant 0 : index
    %0 = vector.load %arg1[%c0, %c0_0, %c0_1] : memref<1x8x3xf32, #tpu.memory_space<vmem>>, vector<1x8x3xf32>
    %1 = vector.shape_cast %0 : vector<1x8x3xf32> to vector<8x3xf32>
    %c0_2 = arith.constant 0 : index
    %c0_3 = arith.constant 0 : index
    %c0_4 = arith.constant 0 : index
    %2 = vector.load %arg2[%c0_2, %c0_3, %c0_4] : memref<1x16x3xf32, #tpu.memory_space<vmem>>, vector<1x16x3xf32>
    %3 = vector.shape_cast %2 : vector<1x16x3xf32> to vector<16x3xf32>
    %c0_5 = arith.constant 0 : index
    %c0_6 = arith.constant 0 : index
    %c0_7 = arith.constant 0 : index
    %4 = vector.load %arg3[%c0_5, %c0_6, %c0_7] : memref<1x8x1xf32, #tpu.memory_space<vmem>>, vector<1x8x1xf32>
    %5 = vector.shape_cast %4 : vector<1x8x1xf32> to vector<8x1xf32>
    %c0_8 = arith.constant 0 : index
    %c0_9 = arith.constant 0 : index
    %c0_10 = arith.constant 0 : index
    %6 = vector.load %arg4[%c0_8, %c0_9, %c0_10] : memref<1x8x16xf32, #tpu.memory_space<vmem>>, vector<1x8x16xf32>
    %7 = vector.shape_cast %6 : vector<1x8x16xf32> to vector<8x16xf32>
    %8 = vector.broadcast %5 : vector<8x1xf32> to vector<8x16xf32>
    %9 = arith.cmpf ole, %7, %8 : vector<8x16xf32>
    %10 = arith.extui %9 : vector<8x16xi1> to vector<8x16xi32>
    %11 = arith.sitofp %10 : vector<8x16xi32> to vector<8x16xf32>
    %cst = arith.constant 0.000000e+00 : f32
    %12 = vector.broadcast %cst : f32 to vector<8x1xf32>
    %13 = vector.extract_strided_slice %11 {offsets = [0, 0], sizes = [8, 15], strides = [1, 1]} : vector<8x16xf32> to vector<8x15xf32>
    %14 = tpu.concatenate %12, %13 in 1 : vector<8x1xf32>, vector<8x15xf32> -> vector<8x16xf32>
    %15 = arith.addf %11, %14 : vector<8x16xf32>
    %cst_11 = arith.constant 0.000000e+00 : f32
    %16 = vector.broadcast %cst_11 : f32 to vector<8x2xf32>
    %17 = vector.extract_strided_slice %15 {offsets = [0, 0], sizes = [8, 14], strides = [1, 1]} : vector<8x16xf32> to vector<8x14xf32>
    %18 = tpu.concatenate %16, %17 in 1 : vector<8x2xf32>, vector<8x14xf32> -> vector<8x16xf32>
    %19 = arith.addf %15, %18 : vector<8x16xf32>
    %cst_12 = arith.constant 0.000000e+00 : f32
    %20 = vector.broadcast %cst_12 : f32 to vector<8x4xf32>
    %21 = vector.extract_strided_slice %19 {offsets = [0, 0], sizes = [8, 12], strides = [1, 1]} : vector<8x16xf32> to vector<8x12xf32>
    %22 = tpu.concatenate %20, %21 in 1 : vector<8x4xf32>, vector<8x12xf32> -> vector<8x16xf32>
    %23 = arith.addf %19, %22 : vector<8x16xf32>
    %cst_13 = arith.constant 0.000000e+00 : f32
    %24 = vector.broadcast %cst_13 : f32 to vector<8x8xf32>
    %25 = vector.extract_strided_slice %23 {offsets = [0, 0], sizes = [8, 8], strides = [1, 1]} : vector<8x16xf32> to vector<8x8xf32>
    %26 = tpu.concatenate %24, %25 in 1 : vector<8x8xf32>, vector<8x8xf32> -> vector<8x16xf32>
    %27 = arith.addf %23, %26 : vector<8x16xf32>
    %28 = arith.subf %27, %11 : vector<8x16xf32>
    %29 = arith.fptosi %28 : vector<8x16xf32> to vector<8x16xi32>
    %cst_14 = arith.constant dense<0.000000e+00> : vector<8xf32>
    %30 = vector.multi_reduction <add>, %11, %cst_14 [1] : vector<8x16xf32> to vector<8xf32>
    %31 = vector.shape_cast %30 : vector<8xf32> to vector<8x1xf32>
    %32 = arith.fptosi %31 : vector<8x1xf32> to vector<8x1xi32>
    %33 = tpu.iota {dimensions = array<i32: 1>} : vector<8x4x16xi32>
    %34 = vector.shape_cast %29 : vector<8x16xi32> to vector<8x1x16xi32>
    %35 = vector.shape_cast %9 : vector<8x16xi1> to vector<8x1x16xi1>
    %36 = vector.broadcast %34 : vector<8x1x16xi32> to vector<8x4x16xi32>
    %37 = arith.cmpi eq, %36, %33 : vector<8x4x16xi32>
    %38 = vector.shape_cast %32 : vector<8x1xi32> to vector<8x1x1xi32>
    %39 = vector.broadcast %38 : vector<8x1x1xi32> to vector<8x4x16xi32>
    %40 = arith.cmpi sge, %33, %39 : vector<8x4x16xi32>
    %c0_i32 = arith.constant 0 : i32
    %41 = vector.broadcast %c0_i32 : i32 to vector<8x1x16xi32>
    %42 = arith.cmpi eq, %34, %41 : vector<8x1x16xi32>
    %43 = vector.broadcast %42 : vector<8x1x16xi1> to vector<8x4x16xi1>
    %44 = arith.andi %40, %43 : vector<8x4x16xi1>
    %45 = arith.ori %37, %44 : vector<8x4x16xi1>
    %46 = vector.broadcast %35 : vector<8x1x16xi1> to vector<8x4x16xi1>
    %47 = arith.andi %46, %45 : vector<8x4x16xi1>
    %48 = arith.extui %47 : vector<8x4x16xi1> to vector<8x4x16xi32>
    %49 = arith.sitofp %48 : vector<8x4x16xi32> to vector<8x4x16xf32>
    %50 = vector.shape_cast %49 : vector<8x4x16xf32> to vector<32x16xf32>
    %51 = arith.truncf %50 : vector<32x16xf32> to vector<32x16xbf16>
    %c0_15 = arith.constant 0 : index
    %c0_16 = arith.constant 0 : index
    %52 = vector.load %arg5[%c0_15, %c0_16] : memref<3x4xf32, #tpu.memory_space<vmem>>, vector<3x4xf32>
    %53 = vector.extract_strided_slice %3 {offsets = [0, 0], sizes = [16, 1], strides = [1, 1]} : vector<16x3xf32> to vector<16x1xf32>
    %54 = vector.extract_strided_slice %52 {offsets = [0, 0], sizes = [1, 4], strides = [1, 1]} : vector<3x4xf32> to vector<1x4xf32>
    %55 = vector.broadcast %53 : vector<16x1xf32> to vector<16x4xf32>
    %56 = vector.broadcast %54 : vector<1x4xf32> to vector<16x4xf32>
    %57 = arith.mulf %55, %56 : vector<16x4xf32>
    %58 = vector.extract_strided_slice %3 {offsets = [0, 1], sizes = [16, 1], strides = [1, 1]} : vector<16x3xf32> to vector<16x1xf32>
    %59 = vector.extract_strided_slice %52 {offsets = [1, 0], sizes = [1, 4], strides = [1, 1]} : vector<3x4xf32> to vector<1x4xf32>
    %60 = vector.broadcast %58 : vector<16x1xf32> to vector<16x4xf32>
    %61 = vector.broadcast %59 : vector<1x4xf32> to vector<16x4xf32>
    %62 = arith.mulf %60, %61 : vector<16x4xf32>
    %63 = arith.addf %57, %62 : vector<16x4xf32>
    %64 = vector.extract_strided_slice %3 {offsets = [0, 2], sizes = [16, 1], strides = [1, 1]} : vector<16x3xf32> to vector<16x1xf32>
    %65 = vector.extract_strided_slice %52 {offsets = [2, 0], sizes = [1, 4], strides = [1, 1]} : vector<3x4xf32> to vector<1x4xf32>
    %66 = vector.broadcast %64 : vector<16x1xf32> to vector<16x4xf32>
    %67 = vector.broadcast %65 : vector<1x4xf32> to vector<16x4xf32>
    %68 = arith.mulf %66, %67 : vector<16x4xf32>
    %69 = arith.addf %63, %68 : vector<16x4xf32>
    %c0_17 = arith.constant 0 : index
    %c0_18 = arith.constant 0 : index
    %70 = vector.load %arg6[%c0_17, %c0_18] : memref<3x4xf32, #tpu.memory_space<vmem>>, vector<3x4xf32>
    %71 = vector.extract_strided_slice %1 {offsets = [0, 0], sizes = [8, 1], strides = [1, 1]} : vector<8x3xf32> to vector<8x1xf32>
    %72 = vector.extract_strided_slice %70 {offsets = [0, 0], sizes = [1, 4], strides = [1, 1]} : vector<3x4xf32> to vector<1x4xf32>
    %73 = vector.broadcast %71 : vector<8x1xf32> to vector<8x4xf32>
    %74 = vector.broadcast %72 : vector<1x4xf32> to vector<8x4xf32>
    %75 = arith.mulf %73, %74 : vector<8x4xf32>
    %76 = vector.extract_strided_slice %1 {offsets = [0, 1], sizes = [8, 1], strides = [1, 1]} : vector<8x3xf32> to vector<8x1xf32>
    %77 = vector.extract_strided_slice %70 {offsets = [1, 0], sizes = [1, 4], strides = [1, 1]} : vector<3x4xf32> to vector<1x4xf32>
    %78 = vector.broadcast %76 : vector<8x1xf32> to vector<8x4xf32>
    %79 = vector.broadcast %77 : vector<1x4xf32> to vector<8x4xf32>
    %80 = arith.mulf %78, %79 : vector<8x4xf32>
    %81 = arith.addf %75, %80 : vector<8x4xf32>
    %82 = vector.extract_strided_slice %1 {offsets = [0, 2], sizes = [8, 1], strides = [1, 1]} : vector<8x3xf32> to vector<8x1xf32>
    %83 = vector.extract_strided_slice %70 {offsets = [2, 0], sizes = [1, 4], strides = [1, 1]} : vector<3x4xf32> to vector<1x4xf32>
    %84 = vector.broadcast %82 : vector<8x1xf32> to vector<8x4xf32>
    %85 = vector.broadcast %83 : vector<1x4xf32> to vector<8x4xf32>
    %86 = arith.mulf %84, %85 : vector<8x4xf32>
    %87 = arith.addf %81, %86 : vector<8x4xf32>
    %c0_19 = arith.constant 0 : index
    %c0_20 = arith.constant 0 : index
    %88 = vector.load %arg7[%c0_19, %c0_20] : memref<1x4xf32, #tpu.memory_space<vmem>>, vector<1x4xf32>
    %89 = vector.broadcast %88 : vector<1x4xf32> to vector<8x4xf32>
    %90 = arith.addf %87, %89 : vector<8x4xf32>
    %91 = arith.truncf %69 : vector<16x4xf32> to vector<16x4xbf16>
    %cst_21 = arith.constant dense<0.000000e+00> : vector<32x4xf32>
    %92 = tpu.matmul %51, %91, %cst_21 {dimension_numbers = #tpu.dot_dimension_numbers<[1], [0], [0], [1], [0, 0, 1, 1], [], []>} : vector<32x16xbf16>, vector<16x4xbf16>, vector<32x4xf32> -> vector<32x4xf32>
    %93 = vector.shape_cast %92 : vector<32x4xf32> to vector<8x4x4xf32>
    %94 = vector.shape_cast %90 : vector<8x4xf32> to vector<8x1x4xf32>
    %95 = vector.broadcast %94 : vector<8x1x4xf32> to vector<8x4x4xf32>
    %96 = arith.addf %93, %95 : vector<8x4x4xf32>
    %97 = vector.shape_cast %96 : vector<8x4x4xf32> to vector<32x4xf32>
    %c0_22 = arith.constant 0 : index
    %c0_23 = arith.constant 0 : index
    %c0_24 = arith.constant 0 : index
    %98 = vector.load %arg8[%c0_22, %c0_23, %c0_24] : memref<1x32x4xf32, #tpu.memory_space<vmem>>, vector<1x32x4xf32>
    %99 = vector.shape_cast %98 : vector<1x32x4xf32> to vector<32x4xf32>
    %100 = vector.shape_cast %97 : vector<32x4xf32> to vector<1x32x4xf32>
    tpu.vector_store %arg8[%c0_22, %c0_23, %c0_24], %100 {strides = array<i32>} : memref<1x32x4xf32, #tpu.memory_space<vmem>>, vector<1x32x4xf32>,
    return
  }
  func.func @transform_0(%arg0: i32) -> (i32, i32, i32) {
    %c0_i32 = arith.constant 0 : i32
    %c0_i32_0 = arith.constant 0 : i32
    %c0_i32_1 = arith.constant 0 : i32
    return %arg0, %c0_i32, %c0_i32_0 : i32, i32, i32
  }
  func.func @transform_1(%arg0: i32) -> (i32, i32, i32) {
    %c0_i32 = arith.constant 0 : i32
    %c0_i32_0 = arith.constant 0 : i32
    %c0_i32_1 = arith.constant 0 : i32
    return %arg0, %c0_i32, %c0_i32_0 : i32, i32, i32
  }
  func.func @transform_2(%arg0: i32) -> (i32, i32, i32) {
    %c0_i32 = arith.constant 0 : i32
    %c0_i32_0 = arith.constant 0 : i32
    %c0_i32_1 = arith.constant 0 : i32
    return %arg0, %c0_i32, %c0_i32_0 : i32, i32, i32
  }
  func.func @transform_3(%arg0: i32) -> (i32, i32, i32) {
    %c0_i32 = arith.constant 0 : i32
    %c0_i32_0 = arith.constant 0 : i32
    %c0_i32_1 = arith.constant 0 : i32
    return %arg0, %c0_i32, %c0_i32_0 : i32, i32, i32
  }
  func.func @transform_4(%arg0: i32) -> (i32, i32) {
    %c0_i32 = arith.constant 0 : i32
    %c0_i32_0 = arith.constant 0 : i32
    %c0_i32_1 = arith.constant 0 : i32
    return %c0_i32, %c0_i32_0 : i32, i32
  }
  func.func @transform_5(%arg0: i32) -> (i32, i32) {
    %c0_i32 = arith.constant 0 : i32
    %c0_i32_0 = arith.constant 0 : i32
    %c0_i32_1 = arith.constant 0 : i32
    return %c0_i32, %c0_i32_0 : i32, i32
  }
  func.func @transform_6(%arg0: i32) -> (i32, i32) {
    %c0_i32 = arith.constant 0 : i32
    %c0_i32_0 = arith.constant 0 : i32
    %c0_i32_1 = arith.constant 0 : i32
    return %c0_i32, %c0_i32_0 : i32, i32
  }
  func.func @transform_7(%arg0: i32) -> (i32, i32, i32) {
    %c0_i32 = arith.constant 0 : i32
    %c0_i32_0 = arith.constant 0 : i32
    %c0_i32_1 = arith.constant 0 : i32
    return %arg0, %c0_i32, %c0_i32_0 : i32, i32, i32
  }
}

</mosaic_0001>

<llo_original>
// kernel: tpu_custom_call.1
$region0: #{tpu_custom_call.1}
  #allocation0 [shape = 'u32[]', space=smem, size = 0x4, offset = 0x4, fixed_abs, tag = 'smem constant byte address 0x4 - core index']
  #allocation1 [shape = 'u32[144,128]{1,0:T(1,128)}', space=vmem, size = 0x12000, scoped, tag = 'internal scratch']
  %s0 = inlined_call_operand.vmem [shape: f32[2,8,3], index: 0, kind: input, shape index: {}]
  %s1 = inlined_call_operand.vmem [shape: f32[2,16,3], index: 1, kind: input, shape index: {}]
  %s2 = inlined_call_operand.vmem [shape: f32[2,8,1], index: 2, kind: input, shape index: {}]
  %s3 = inlined_call_operand.vmem [shape: f32[2,8,16], index: 3, kind: input, shape index: {}]
  %s4 = inlined_call_operand.vmem [shape: f32[3,4], index: 4, kind: input, shape index: {}]
  %s5 = inlined_call_operand.vmem [shape: f32[3,4], index: 5, kind: input, shape index: {}]
  %s6 = inlined_call_operand.vmem [shape: f32[1,4], index: 6, kind: input, shape index: {}]
  %s7 = inlined_call_operand.vmem [shape: f32[2,32,4], index: 7, kind: output, shape index: {}]
  %s8 = sld [smem:[#allocation0]]
  $region61: #{tpu_custom_call.1} parent=0
    _
  %s10 = ssub.s32 1, %s8
  %s11 = scalar_select 0, %s10, %s8
  loop: start=0, step=1, limit=4
  $region2: #{tpu_custom_call.1} parent=0 // loop_pre_header
    _
  $region3: #{tpu_custom_call.1} parent=0 // loop_header
    %s13 = sphi 0, %s17
    %p14 = scmp.ge.s32.totalorder %s13, 4
    %s23 = sphi 0, %s25
    %s26 = sphi 0, %s23
    %s27 = sphi 0, %s26
    %s43 = sphi 0, %s27
    %s49 = sphi 0, %s51
    %s52 = sphi 0, %s49
    %s53 = sphi 0, %s52
    %s69 = sphi 0, %s53
    %s75 = sphi 0, %s77
    %s78 = sphi 0, %s75
    %s79 = sphi 0, %s78
    %s95 = sphi 0, %s79
    %s101 = sphi 0, %s103
    %s104 = sphi 0, %s101
    %s105 = sphi 0, %s104
    %s121 = sphi 0, %s105
    %s125 = sphi 0, %s125
    %s127 = sphi 0, %s125
    %s128 = sphi 0, %s127
    %s142 = sphi 0, %s128
    %s146 = sphi 0, %s146
    %s148 = sphi 0, %s146
    %s149 = sphi 0, %s148
    %s163 = sphi 0, %s149
    %s167 = sphi 0, %s167
    %s169 = sphi 0, %s167
    %s170 = sphi 0, %s169
    %s184 = sphi 0, %s170
    %s190 = sphi 0, %s192
    %s193 = sphi 0, %s190
    %s194 = sphi 0, %s193
    %s210 = sphi 0, %s194
  $region4: #{tpu_custom_call.1} parent=0 // loop_header_branch
    %16 = sbr.rel (%p14) target = $region8
  $region5: #{tpu_custom_call.1} parent=0 // loop_body
    %s18 = ssub.s32 %s13, 1
    %s19 = ssub.s32 %s13, 2
    %s20 = sadd.s32 %s13, 1
    %s21 = ssub.s32 %s13, %s20
    %p22 = scmp.eq.s32.totalorder %s21, 0
    %s24 = sadd.s32 %s23, 1
    %s25 = scalar_select %p22, %s23, %s24
    %p28 = pneg %p22
    %p29 = scmp.eq.s32.totalorder %s13, 1
    %p30 = por %p28, %p29
    %p31 = scmp.ne.s32.totalorder %s23, %s26
    %p32 = scmp.eq.s32.totalorder %s13, 0
    %p33 = por %p31, %p32
    %p34 = scmp.ne.s32.totalorder %s23, %s26
    %p35 = scmp.eq.s32.totalorder %s18, 1
    %p36 = por %p34, %p35
    %p37 = scmp.ne.s32.totalorder %s26, %s27
    %p38 = scmp.eq.s32.totalorder %s18, 0
    %p39 = por %p37, %p38
    %p40 = scmp.ne.s32.totalorder %s26, %s27
    %p41 = scmp.eq.s32.totalorder %s19, 1
    %p42 = por %p40, %p41
    %p44 = scmp.ne.s32.totalorder %s27, %s43
    %p45 = scmp.eq.s32.totalorder %s19, 0
    %p46 = por %p44, %p45
    %s47 = ssub.s32 %s13, %s20
    %p48 = scmp.eq.s32.totalorder %s47, 0
    %s50 = sadd.s32 %s49, 1
    %s51 = scalar_select %p48, %s49, %s50
    %p54 = pneg %p48
    %p55 = scmp.eq.s32.totalorder %s13, 1
    %p56 = por %p54, %p55
    %p57 = scmp.ne.s32.totalorder %s49, %s52
    %p58 = scmp.eq.s32.totalorder %s13, 0
    %p59 = por %p57, %p58
    %p60 = scmp.ne.s32.totalorder %s49, %s52
    %p61 = scmp.eq.s32.totalorder %s18, 1
    %p62 = por %p60, %p61
    %p63 = scmp.ne.s32.totalorder %s52, %s53
    %p64 = scmp.eq.s32.totalorder %s18, 0
    %p65 = por %p63, %p64
    %p66 = scmp.ne.s32.totalorder %s52, %s53
    %p67 = scmp.eq.s32.totalorder %s19, 1
    %p68 = por %p66, %p67
    %p70 = scmp.ne.s32.totalorder %s53, %s69
    %p71 = scmp.eq.s32.totalorder %s19, 0
    %p72 = por %p70, %p71
    %s73 = ssub.s32 %s13, %s20
    %p74 = scmp.eq.s32.totalorder %s73, 0
    %s76 = sadd.s32 %s75, 1
    %s77 = scalar_select %p74, %s75, %s76
    %p80 = pneg %p74
    %p81 = scmp.eq.s32.totalorder %s13, 1
    %p82 = por %p80, %p81
    %p83 = scmp.ne.s32.totalorder %s75, %s78
    %p84 = scmp.eq.s32.totalorder %s13, 0
    %p85 = por %p83, %p84
    %p86 = scmp.ne.s32.totalorder %s75, %s78
    %p87 = scmp.eq.s32.totalorder %s18, 1
    %p88 = por %p86, %p87
    %p89 = scmp.ne.s32.totalorder %s78, %s79
    %p90 = scmp.eq.s32.totalorder %s18, 0
    %p91 = por %p89, %p90
    %p92 = scmp.ne.s32.totalorder %s78, %s79
    %p93 = scmp.eq.s32.totalorder %s19, 1
    %p94 = por %p92, %p93
    %p96 = scmp.ne.s32.totalorder %s79, %s95
    %p97 = scmp.eq.s32.totalorder %s19, 0
    %p98 = por %p96, %p97
    %s99 = ssub.s32 %s13, %s20
    %p100 = scmp.eq.s32.totalorder %s99, 0
    %s102 = sadd.s32 %s101, 1
    %s103 = scalar_select %p100, %s101, %s102
    %p106 = pneg %p100
    %p107 = scmp.eq.s32.totalorder %s13, 1
    %p108 = por %p106, %p107
    %p109 = scmp.ne.s32.totalorder %s101, %s104
    %p110 = scmp.eq.s32.totalorder %s13, 0
    %p111 = por %p109, %p110
    %p112 = scmp.ne.s32.totalorder %s101, %s104
    %p113 = scmp.eq.s32.totalorder %s18, 1
    %p114 = por %p112, %p113
    %p115 = scmp.ne.s32.totalorder %s104, %s105
    %p116 = scmp.eq.s32.totalorder %s18, 0
    %p117 = por %p115, %p116
    %p118 = scmp.ne.s32.totalorder %s104, %s105
    %p119 = scmp.eq.s32.totalorder %s19, 1
    %p120 = por %p118, %p119
    %p122 = scmp.ne.s32.totalorder %s105, %s121
    %p123 = scmp.eq.s32.totalorder %s19, 0
    %p124 = por %p122, %p123
    %s126 = sadd.s32 %s125, 1
    %p129 = scmp.eq.s32.totalorder %s13, 1
    %p130 = scmp.ne.s32.totalorder %s125, %s127
    %p131 = scmp.eq.s32.totalorder %s13, 0
    %p132 = por %p130, %p131
    %p133 = scmp.ne.s32.totalorder %s125, %s127
    %p134 = scmp.eq.s32.totalorder %s18, 1
    %p135 = por %p133, %p134
    %p136 = scmp.ne.s32.totalorder %s127, %s128
    %p137 = scmp.eq.s32.totalorder %s18, 0
    %p138 = por %p136, %p137
    %p139 = scmp.ne.s32.totalorder %s127, %s128
    %p140 = scmp.eq.s32.totalorder %s19, 1
    %p141 = por %p139, %p140
    %p143 = scmp.ne.s32.totalorder %s128, %s142
    %p144 = scmp.eq.s32.totalorder %s19, 0
    %p145 = por %p143, %p144
    %s147 = sadd.s32 %s146, 1
    %p150 = scmp.eq.s32.totalorder %s13, 1
    %p151 = scmp.ne.s32.totalorder %s146, %s148
    %p152 = scmp.eq.s32.totalorder %s13, 0
    %p153 = por %p151, %p152
    %p154 = scmp.ne.s32.totalorder %s146, %s148
    %p155 = scmp.eq.s32.totalorder %s18, 1
    %p156 = por %p154, %p155
    %p157 = scmp.ne.s32.totalorder %s148, %s149
    %p158 = scmp.eq.s32.totalorder %s18, 0
    %p159 = por %p157, %p158
    %p160 = scmp.ne.s32.totalorder %s148, %s149
    %p161 = scmp.eq.s32.totalorder %s19, 1
    %p162 = por %p160, %p161
    %p164 = scmp.ne.s32.totalorder %s149, %s163
    %p165 = scmp.eq.s32.totalorder %s19, 0
    %p166 = por %p164, %p165
    %s168 = sadd.s32 %s167, 1
    %p171 = scmp.eq.s32.totalorder %s13, 1
    %p172 = scmp.ne.s32.totalorder %s167, %s169
    %p173 = scmp.eq.s32.totalorder %s13, 0
    %p174 = por %p172, %p173
    %p175 = scmp.ne.s32.totalorder %s167, %s169
    %p176 = scmp.eq.s32.totalorder %s18, 1
    %p177 = por %p175, %p176
    %p178 = scmp.ne.s32.totalorder %s169, %s170
    %p179 = scmp.eq.s32.totalorder %s18, 0
    %p180 = por %p178, %p179
    %p181 = scmp.ne.s32.totalorder %s169, %s170
    %p182 = scmp.eq.s32.totalorder %s19, 1
    %p183 = por %p181, %p182
    %p185 = scmp.ne.s32.totalorder %s170, %s184
    %p186 = scmp.eq.s32.totalorder %s19, 0
    %p187 = por %p185, %p186
    %s188 = ssub.s32 %s13, %s20
    %p189 = scmp.eq.s32.totalorder %s188, 0
    %s191 = sadd.s32 %s190, 1
    %s192 = scalar_select %p189, %s190, %s191
    %p195 = pneg %p189
    %p196 = scmp.eq.s32.totalorder %s13, 1
    %p197 = por %p195, %p196
    %p198 = scmp.ne.s32.totalorder %s190, %s193
    %p199 = scmp.eq.s32.totalorder %s13, 0
    %p200 = por %p198, %p199
    %p201 = scmp.ne.s32.totalorder %s190, %s193
    %p202 = scmp.eq.s32.totalorder %s18, 1
    %p203 = por %p201, %p202
    %p204 = scmp.ne.s32.totalorder %s193, %s194
    %p205 = scmp.eq.s32.totalorder %s18, 0
    %p206 = por %p204, %p205
    %p207 = scmp.ne.s32.totalorder %s193, %s194
    %p208 = scmp.eq.s32.totalorder %s19, 1
    %p209 = por %p207, %p208
    %p211 = scmp.ne.s32.totalorder %s194, %s210
    %p212 = scmp.eq.s32.totalorder %s19, 0
    %p213 = por %p211, %p212
    %p214 = scmp.le.s32.totalorder 1, %s13
    %p215 = scmp.lt.s32.totalorder %s13, 3
    %p216 = pnand %p214, %p215
    %p217 = pneg %p216
    // Predicated region
    $region9: #{tpu_custom_call.1} parent=5 // pred_check
      _
    $region10: #{tpu_custom_call.1} parent=5 // pred_check_branch
      %219 = sbr.rel (%p216) target = $region12
    $region11: #{tpu_custom_call.1} parent=5 // pred_region
      %s220 = ssub.s32 %s13, 1
      // Predicated region
      $region13: #{tpu_custom_call.1} parent=11 // pred_check
        %p221 = pneg %p138
      $region14: #{tpu_custom_call.1} parent=11 // pred_check_branch
        %223 = sbr.rel (%p221) target = $region16
      $region15: #{tpu_custom_call.1} parent=11 // pred_region
        _
      $region16: #{tpu_custom_call.1} parent=11 // pred_fallthru
        _
      // Predicated region
      $region17: #{tpu_custom_call.1} parent=11 // pred_check
        %p224 = pneg %p159
      $region18: #{tpu_custom_call.1} parent=11 // pred_check_branch
        %226 = sbr.rel (%p224) target = $region20
      $region19: #{tpu_custom_call.1} parent=11 // pred_region
        _
      $region20: #{tpu_custom_call.1} parent=11 // pred_fallthru
        _
      // Predicated region
      $region21: #{tpu_custom_call.1} parent=11 // pred_check
        %p227 = pneg %p180
      $region22: #{tpu_custom_call.1} parent=11 // pred_check_branch
        %229 = sbr.rel (%p227) target = $region24
      $region23: #{tpu_custom_call.1} parent=11 // pred_region
        _
      $region24: #{tpu_custom_call.1} parent=11 // pred_fallthru
        _
    $region12: #{tpu_custom_call.1} parent=5 // pred_fallthru
      _
    %p230 = scmp.lt.s32.totalorder %s13, 2
    // Predicated region
    $region25: #{tpu_custom_call.1} parent=5 // pred_check
      %p231 = pneg %p230
    $region26: #{tpu_custom_call.1} parent=5 // pred_check_branch
      %233 = sbr.rel (%p231) target = $region28
    $region27: #{tpu_custom_call.1} parent=5 // pred_region
      // Predicated region
      $region29: #{tpu_custom_call.1} parent=27 // pred_check
        %p234 = pneg %p33
      $region30: #{tpu_custom_call.1} parent=27 // pred_check_branch
        %236 = sbr.rel (%p234) target = $region32
      $region31: #{tpu_custom_call.1} parent=27 // pred_region
        %p237 = scmp.lt.s32.totalorder %s13, 1
        %s238 = scalar_select %p237, %s13, 1
        %s239 = smul.addr %s238, 8
        %s240 = scalar_lea.vmem %s0, %s239
      $region32: #{tpu_custom_call.1} parent=27 // pred_fallthru
        _
      // Predicated region
      $region33: #{tpu_custom_call.1} parent=27 // pred_check
        %p241 = pneg %p59
      $region34: #{tpu_custom_call.1} parent=27 // pred_check_branch
        %243 = sbr.rel (%p241) target = $region36
      $region35: #{tpu_custom_call.1} parent=27 // pred_region
        %p244 = scmp.lt.s32.totalorder %s13, 1
        %s245 = scalar_select %p244, %s13, 1
        %s246 = smul.addr %s245, 2
        %s247 = smul.addr %s246, 8
        %s248 = scalar_lea.vmem %s1, %s247
      $region36: #{tpu_custom_call.1} parent=27 // pred_fallthru
        _
      // Predicated region
      $region37: #{tpu_custom_call.1} parent=27 // pred_check
        %p249 = pneg %p85
      $region38: #{tpu_custom_call.1} parent=27 // pred_check_branch
        %251 = sbr.rel (%p249) target = $region40
      $region39: #{tpu_custom_call.1} parent=27 // pred_region
        %p252 = scmp.lt.s32.totalorder %s13, 1
        %s253 = scalar_select %p252, %s13, 1
        %s254 = smul.addr %s253, 8
        %s255 = scalar_lea.vmem %s2, %s254
      $region40: #{tpu_custom_call.1} parent=27 // pred_fallthru
        _
      // Predicated region
      $region41: #{tpu_custom_call.1} parent=27 // pred_check
        %p256 = pneg %p111
      $region42: #{tpu_custom_call.1} parent=27 // pred_check_branch
        %258 = sbr.rel (%p256) target = $region44
      $region43: #{tpu_custom_call.1} parent=27 // pred_region
        %p259 = scmp.lt.s32.totalorder %s13, 1
        %s260 = scalar_select %p259, %s13, 1
        %s261 = smul.addr %s260, 8
        %s262 = scalar_lea.vmem %s3, %s261
      $region44: #{tpu_custom_call.1} parent=27 // pred_fallthru
        _
    $region28: #{tpu_custom_call.1} parent=5 // pred_fallthru
      _
    %p263 = scmp.le.s32.totalorder 1, %s13
    %p264 = scmp.lt.s32.totalorder %s13, 3
    %p265 = pnand %p263, %p264
    %p266 = pneg %p265
    // Predicated region
    $region45: #{tpu_custom_call.1} parent=5 // pred_check
      _
    $region46: #{tpu_custom_call.1} parent=5 // pred_check_branch
      %268 = sbr.rel (%p265) target = $region48
    $region47: #{tpu_custom_call.1} parent=5 // pred_region
      %s269 = ssub.s32 %s13, 1
      %p270 = scmp.lt.s32.totalorder %s18, 1
      %s271 = scalar_select %p270, %s18, 1
      %s272 = smul.addr %s271, 8
      %s273 = scalar_lea.vmem %s0, %s272
      %p274 = pneg %p39
      %p275 = pneg %p36
      %p276 = scmp.lt.s32.totalorder %s18, 1
      %s277 = scalar_select %p276, %s18, 1
      %s278 = smul.addr %s277, 2
      %s279 = smul.addr %s278, 8
      %s280 = scalar_lea.vmem %s1, %s279
      %p281 = pneg %p65
      %p282 = pneg %p62
      %p283 = scmp.lt.s32.totalorder %s18, 1
      %s284 = scalar_select %p283, %s18, 1
      %s285 = smul.addr %s284, 8
      %s286 = scalar_lea.vmem %s2, %s285
      %p287 = pneg %p91
      %p288 = pneg %p88
      %p289 = scmp.lt.s32.totalorder %s18, 1
      %s290 = scalar_select %p289, %s18, 1
      %s291 = smul.addr %s290, 8
      %s292 = scalar_lea.vmem %s3, %s291
      %p293 = pneg %p117
      %p294 = pneg %p114
      %p295 = pneg %p138
      %p296 = pneg %p135
      %p297 = pneg %p159
      %p298 = pneg %p156
      %p299 = pneg %p180
      %p300 = pneg %p177
      %p301 = pneg %p206
      %p302 = pneg %p203
      %p303 = scmp.lt.s32.totalorder %s18, 1
      %s304 = scalar_select %p303, %s18, 1
      %s305 = smul.addr %s304, 4
      %s306 = smul.addr %s305, 8
      %s307 = scalar_lea.vmem %s7, %s306
      %p308 = scmp.lt.s32.totalorder %s18, 1
      %s309 = scalar_select %p308, %s18, 1
      %s310 = smul.addr %s309, 8
      %s311 = scalar_lea.vmem %s0, %s310
      %p312 = scmp.lt.s32.totalorder %s18, 1
      %s313 = scalar_select %p312, %s18, 1
      %s314 = smul.addr %s313, 2
      %s315 = smul.addr %s314, 8
      %s316 = scalar_lea.vmem %s1, %s315
      %p317 = scmp.lt.s32.totalorder %s18, 1
      %s318 = scalar_select %p317, %s18, 1
      %s319 = smul.addr %s318, 8
      %s320 = scalar_lea.vmem %s2, %s319
      %p321 = scmp.lt.s32.totalorder %s18, 1
      %s322 = scalar_select %p321, %s18, 1
      %s323 = smul.addr %s322, 8
      %s324 = scalar_lea.vmem %s3, %s323
      %p325 = scmp.lt.s32.totalorder %s18, 1
      %s326 = scalar_select %p325, %s18, 1
      %s327 = smul.addr %s326, 4
      %s328 = smul.addr %s327, 8
      %s329 = scalar_lea.vmem %s7, %s328
      %v331 = vld [vmem:[%s311] sm:$0xff]
      %v332 = vld [vmem:[%s316] sm:$0xff]
      %v333 = vld [vmem:[%s316 + $0x8] sm:$0xff]
      %v334 = vld [vmem:[%s320] sm:$0xff]
      %v335 = vld [vmem:[%s324] sm:$0xff]
      %337 = vset.pattern.permute.xlu0 0
      %338 = vperm.xlu0 %337, %v334
      %v339 = vpop.permute.xlu0 %338
      %vm341 = vcmp.le.f32.partialorder %v335, %v339
      %v342 = vsel %vm341, 1, 0
      %v343 = vcvt.s32.f32 %v342
      %345 = vrot.lane.b32.xlu0 %v343, 1
      %v346 = vpop.permute.xlu0 %345
      %vm348 = vcmask 7168
      %v349 = vsel %vm348, 0.0, %v346
      %v350 = vadd.f32 %v343, %v349
      %352 = vrot.lane.b32.xlu0 %v350, 2
      %v353 = vpop.permute.xlu0 %352
      %vm355 = vcmask 15360
      %v356 = vsel %vm355, 0.0, %v353
      %v357 = vadd.f32 %v350, %v356
      %359 = vrot.lane.b32.xlu0 %v357, 4
      %v360 = vpop.permute.xlu0 %359
      %vm362 = vcmask 31744
      %v363 = vsel %vm362, 0.0, %v360
      %v364 = vadd.f32 %v357, %v363
      %366 = vrot.lane.b32.xlu0 %v364, 8
      %v367 = vpop.permute.xlu0 %366
      %vm369 = vcmask 64512
      %v370 = vsel %vm369, 0.0, %v367
      %v371 = vadd.f32 %v364, %v370
      %v372 = vsub.f32 %v371, %v343
      %v373 = vcvt.f32.s32.to.zero.pseudo %v372
      %vm374 = vcmask 130048
      %v375 = vsel %vm374, %v343, 0.0
      %376 = vadd.xlane.f32.xlu0 %v375
      %v377 = vpop.xlane.xlu0 %376
      %v378 = vcvt.f32.s32.to.zero.pseudo %v377
      %v379 = vlaneseq
      %v380 = vshrl.u32 %v379, 7
      %v381 = vcombine.high %v373, %v373
      %v383 = vunpack.c.l.s4 1966171168
      %v384 = vunpack.c.0.s8 %v383
      %v385 = vlaneseq
      %v386 = vshrl.u32 %v385, 7
      %v387 = vsub.s32 %v384, %v386
      %v388 = vrot.slane %v373, %v387
      %v390 = vunpack.c.l.s4 1966171168
      %v391 = vunpack.c.0.s8 %v390
      %v392 = vlaneseq
      %v393 = vshrl.u32 %v392, 7
      %v394 = vsub.s32 %v391, %v393
      %v395 = vrot.slane %v381, %v394
      %v396 = vcombine.high %v388, %v388
      %v397 = vcombine.high %v395, %v395
      %v399 = vunpack.c.l.s4 1966171168
      %v400 = vunpack.c.0.s8 %v399
      %v401 = vlaneseq
      %v402 = vshrl.u32 %v401, 7
      %v403 = vsub.s32 %v400, %v402
      %v404 = vrot.slane %v388, %v403
      %v406 = vunpack.c.l.s4 1966171168
      %v407 = vunpack.c.0.s8 %v406
      %v408 = vlaneseq
      %v409 = vshrl.u32 %v408, 7
      %v410 = vsub.s32 %v407, %v409
      %v411 = vrot.slane %v395, %v410
      %v413 = vunpack.c.l.s4 1966171168
      %v414 = vunpack.c.0.s8 %v413
      %v415 = vlaneseq
      %v416 = vshrl.u32 %v415, 7
      %v417 = vsub.s32 %v414, %v416
      %v418 = vrot.slane %v396, %v417
      %v420 = vunpack.c.l.s4 1966171168
      %v421 = vunpack.c.0.s8 %v420
      %v422 = vlaneseq
      %v423 = vshrl.u32 %v422, 7
      %v424 = vsub.s32 %v421, %v423
      %v425 = vrot.slane %v397, %v424
      %v426 = vcombine.high %v404, %v404
      %v427 = vcombine.high %v411, %v411
      %v428 = vcombine.high %v418, %v418
      %v429 = vcombine.high %v425, %v425
      %v430 = vcombine.high %v342, %v342
      %v432 = vunpack.c.l.s4 1966171168
      %v433 = vunpack.c.0.s8 %v432
      %v434 = vlaneseq
      %v435 = vshrl.u32 %v434, 7
      %v436 = vsub.s32 %v433, %v435
      %v437 = vrot.slane %v342, %v436
      %v439 = vunpack.c.l.s4 1966171168
      %v440 = vunpack.c.0.s8 %v439
      %v441 = vlaneseq
      %v442 = vshrl.u32 %v441, 7
      %v443 = vsub.s32 %v440, %v442
      %v444 = vrot.slane %v430, %v443
      %v445 = vcombine.high %v437, %v437
      %v446 = vcombine.high %v444, %v444
      %v448 = vunpack.c.l.s4 1966171168
      %v449 = vunpack.c.0.s8 %v448
      %v450 = vlaneseq
      %v451 = vshrl.u32 %v450, 7
      %v452 = vsub.s32 %v449, %v451
      %v453 = vrot.slane %v437, %v452
      %v455 = vunpack.c.l.s4 1966171168
      %v456 = vunpack.c.0.s8 %v455
      %v457 = vlaneseq
      %v458 = vshrl.u32 %v457, 7
      %v459 = vsub.s32 %v456, %v458
      %v460 = vrot.slane %v444, %v459
      %v462 = vunpack.c.l.s4 1966171168
      %v463 = vunpack.c.0.s8 %v462
      %v464 = vlaneseq
      %v465 = vshrl.u32 %v464, 7
      %v466 = vsub.s32 %v463, %v465
      %v467 = vrot.slane %v445, %v466
      %v469 = vunpack.c.l.s4 1966171168
      %v470 = vunpack.c.0.s8 %v469
      %v471 = vlaneseq
      %v472 = vshrl.u32 %v471, 7
      %v473 = vsub.s32 %v470, %v472
      %v474 = vrot.slane %v446, %v473
      %v475 = vcombine.high %v453, %v453
      %v476 = vcombine.high %v460, %v460
      %v477 = vcombine.high %v467, %v467
      %v478 = vcombine.high %v474, %v474
      %vm479 = vcmp.ne.s32.totalorder %v453, 0
      %vm480 = vcmp.ne.s32.totalorder %v467, 0
      %vm481 = vcmp.ne.s32.totalorder %v475, 0
      %vm482 = vcmp.ne.s32.totalorder %v477, 0
      %vm483 = vcmp.ne.s32.totalorder %v460, 0
      %vm484 = vcmp.ne.s32.totalorder %v474, 0
      %vm485 = vcmp.ne.s32.totalorder %v476, 0
      %vm486 = vcmp.ne.s32.totalorder %v478, 0
      %v487 = vlaneseq
      %v488 = vshrl.u32 %v487, 7
      %v489 = vsub.s32 0, %v488
      %v490 = vrot.slane %v404, %v489
      %v491 = vlaneseq
      %v492 = vshrl.u32 %v491, 7
      %v493 = vsub.s32 0, %v492
      %v494 = vrot.slane %v418, %v493
      %v495 = vlaneseq
      %v496 = vshrl.u32 %v495, 7
      %v497 = vsub.s32 0, %v496
      %v498 = vrot.slane %v426, %v497
      %v499 = vlaneseq
      %v500 = vshrl.u32 %v499, 7
      %v501 = vsub.s32 0, %v500
      %v502 = vrot.slane %v428, %v501
      %v503 = vlaneseq
      %v504 = vshrl.u32 %v503, 7
      %v505 = vsub.s32 0, %v504
      %v506 = vrot.slane %v411, %v505
      %v507 = vlaneseq
      %v508 = vshrl.u32 %v507, 7
      %v509 = vsub.s32 0, %v508
      %v510 = vrot.slane %v425, %v509
      %v511 = vlaneseq
      %v512 = vshrl.u32 %v511, 7
      %v513 = vsub.s32 0, %v512
      %v514 = vrot.slane %v427, %v513
      %v515 = vlaneseq
      %v516 = vshrl.u32 %v515, 7
      %v517 = vsub.s32 0, %v516
      %v518 = vrot.slane %v429, %v517
      %vm519 = vcmp.eq.s32.totalorder %v490, %v380
      %vm520 = vcmp.eq.s32.totalorder %v494, %v380
      %vm521 = vcmp.eq.s32.totalorder %v498, %v380
      %vm522 = vcmp.eq.s32.totalorder %v502, %v380
      %vm523 = vcmp.eq.s32.totalorder %v506, %v380
      %vm524 = vcmp.eq.s32.totalorder %v510, %v380
      %vm525 = vcmp.eq.s32.totalorder %v514, %v380
      %vm526 = vcmp.eq.s32.totalorder %v518, %v380
      %v527 = vlaneseq
      %v528 = vshrl.u32 %v527, 7
      %v529 = vsub.s32 0, %v528
      %v530 = vrot.slane %v378, %v529
      %v531 = vlaneseq
      %v532 = vshrl.u32 %v531, 7
      %v533 = vsub.s32 1, %v532
      %v534 = vrot.slane %v378, %v533
      %v535 = vlaneseq
      %v536 = vshrl.u32 %v535, 7
      %v537 = vsub.s32 2, %v536
      %v538 = vrot.slane %v378, %v537
      %v539 = vlaneseq
      %v540 = vshrl.u32 %v539, 7
      %v541 = vsub.s32 3, %v540
      %v542 = vrot.slane %v378, %v541
      %v543 = vlaneseq
      %v544 = vshrl.u32 %v543, 7
      %v545 = vsub.s32 4, %v544
      %v546 = vrot.slane %v378, %v545
      %v547 = vlaneseq
      %v548 = vshrl.u32 %v547, 7
      %v549 = vsub.s32 5, %v548
      %v550 = vrot.slane %v378, %v549
      %v551 = vlaneseq
      %v552 = vshrl.u32 %v551, 7
      %v553 = vsub.s32 6, %v552
      %v554 = vrot.slane %v378, %v553
      %v555 = vlaneseq
      %v556 = vshrl.u32 %v555, 7
      %v557 = vsub.s32 7, %v556
      %v558 = vrot.slane %v378, %v557
      %vm559 = vcmp.ge.s32.totalorder %v380, %v530
      %vm560 = vcmp.ge.s32.totalorder %v380, %v534
      %vm561 = vcmp.ge.s32.totalorder %v380, %v538
      %vm562 = vcmp.ge.s32.totalorder %v380, %v542
      %vm563 = vcmp.ge.s32.totalorder %v380, %v546
      %vm564 = vcmp.ge.s32.totalorder %v380, %v550
      %vm565 = vcmp.ge.s32.totalorder %v380, %v554
      %vm566 = vcmp.ge.s32.totalorder %v380, %v558
      %vm567 = vcmp.eq.s32.totalorder %v404, 0
      %vm568 = vcmp.eq.s32.totalorder %v418, 0
      %vm569 = vcmp.eq.s32.totalorder %v426, 0
      %vm570 = vcmp.eq.s32.totalorder %v428, 0
      %vm571 = vcmp.eq.s32.totalorder %v411, 0
      %vm572 = vcmp.eq.s32.totalorder %v425, 0
      %vm573 = vcmp.eq.s32.totalorder %v427, 0
      %vm574 = vcmp.eq.s32.totalorder %v429, 0
      %v575 = vsel %vm567, 1, 0
      %v576 = vsel %vm568, 1, 0
      %v577 = vsel %vm569, 1, 0
      %v578 = vsel %vm570, 1, 0
      %v579 = vsel %vm571, 1, 0
      %v580 = vsel %vm572, 1, 0
      %v581 = vsel %vm573, 1, 0
      %v582 = vsel %vm574, 1, 0
      %v583 = vlaneseq
      %v584 = vshrl.u32 %v583, 7
      %v585 = vsub.s32 0, %v584
      %v586 = vrot.slane %v575, %v585
      %v587 = vlaneseq
      %v588 = vshrl.u32 %v587, 7
      %v589 = vsub.s32 0, %v588
      %v590 = vrot.slane %v576, %v589
      %v591 = vlaneseq
      %v592 = vshrl.u32 %v591, 7
      %v593 = vsub.s32 0, %v592
      %v594 = vrot.slane %v577, %v593
      %v595 = vlaneseq
      %v596 = vshrl.u32 %v595, 7
      %v597 = vsub.s32 0, %v596
      %v598 = vrot.slane %v578, %v597
      %v599 = vlaneseq
      %v600 = vshrl.u32 %v599, 7
      %v601 = vsub.s32 0, %v600
      %v602 = vrot.slane %v579, %v601
      %v603 = vlaneseq
      %v604 = vshrl.u32 %v603, 7
      %v605 = vsub.s32 0, %v604
      %v606 = vrot.slane %v580, %v605
      %v607 = vlaneseq
      %v608 = vshrl.u32 %v607, 7
      %v609 = vsub.s32 0, %v608
      %v610 = vrot.slane %v581, %v609
      %v611 = vlaneseq
      %v612 = vshrl.u32 %v611, 7
      %v613 = vsub.s32 0, %v612
      %v614 = vrot.slane %v582, %v613
      %vm615 = vcmp.eq.s32.totalorder %v586, 1
      %vm616 = vcmp.eq.s32.totalorder %v590, 1
      %vm617 = vcmp.eq.s32.totalorder %v594, 1
      %vm618 = vcmp.eq.s32.totalorder %v598, 1
      %vm619 = vcmp.eq.s32.totalorder %v602, 1
      %vm620 = vcmp.eq.s32.totalorder %v606, 1
      %vm621 = vcmp.eq.s32.totalorder %v610, 1
      %vm622 = vcmp.eq.s32.totalorder %v614, 1
      %vm623 = vmand %vm559, %vm615
      %vm624 = vmand %vm560, %vm616
      %vm625 = vmand %vm561, %vm617
      %vm626 = vmand %vm562, %vm618
      %vm627 = vmand %vm563, %vm619
      %vm628 = vmand %vm564, %vm620
      %vm629 = vmand %vm565, %vm621
      %vm630 = vmand %vm566, %vm622
      %vm631 = vmor %vm519, %vm623
      %vm632 = vmor %vm520, %vm624
      %vm633 = vmor %vm521, %vm625
      %vm634 = vmor %vm522, %vm626
      %vm635 = vmor %vm523, %vm627
      %vm636 = vmor %vm524, %vm628
      %vm637 = vmor %vm525, %vm629
      %vm638 = vmor %vm526, %vm630
      %v639 = vsel %vm479, 1, 0
      %v640 = vsel %vm480, 1, 0
      %v641 = vsel %vm481, 1, 0
      %v642 = vsel %vm482, 1, 0
      %v643 = vsel %vm483, 1, 0
      %v644 = vsel %vm484, 1, 0
      %v645 = vsel %vm485, 1, 0
      %v646 = vsel %vm486, 1, 0
      %v647 = vlaneseq
      %v648 = vshrl.u32 %v647, 7
      %v649 = vsub.s32 0, %v648
      %v650 = vrot.slane %v639, %v649
      %v651 = vlaneseq
      %v652 = vshrl.u32 %v651, 7
      %v653 = vsub.s32 0, %v652
      %v654 = vrot.slane %v640, %v653
      %v655 = vlaneseq
      %v656 = vshrl.u32 %v655, 7
      %v657 = vsub.s32 0, %v656
      %v658 = vrot.slane %v641, %v657
      %v659 = vlaneseq
      %v660 = vshrl.u32 %v659, 7
      %v661 = vsub.s32 0, %v660
      %v662 = vrot.slane %v642, %v661
      %v663 = vlaneseq
      %v664 = vshrl.u32 %v663, 7
      %v665 = vsub.s32 0, %v664
      %v666 = vrot.slane %v643, %v665
      %v667 = vlaneseq
      %v668 = vshrl.u32 %v667, 7
      %v669 = vsub.s32 0, %v668
      %v670 = vrot.slane %v644, %v669
      %v671 = vlaneseq
      %v672 = vshrl.u32 %v671, 7
      %v673 = vsub.s32 0, %v672
      %v674 = vrot.slane %v645, %v673
      %v675 = vlaneseq
      %v676 = vshrl.u32 %v675, 7
      %v677 = vsub.s32 0, %v676
      %v678 = vrot.slane %v646, %v677
      %vm679 = vcmp.eq.s32.totalorder %v650, 1
      %vm680 = vcmp.eq.s32.totalorder %v654, 1
      %vm681 = vcmp.eq.s32.totalorder %v658, 1
      %vm682 = vcmp.eq.s32.totalorder %v662, 1
      %vm683 = vcmp.eq.s32.totalorder %v666, 1
      %vm684 = vcmp.eq.s32.totalorder %v670, 1
      %vm685 = vcmp.eq.s32.totalorder %v674, 1
      %vm686 = vcmp.eq.s32.totalorder %v678, 1
      %vm687 = vmand %vm679, %vm631
      %vm688 = vmand %vm680, %vm632
      %vm689 = vmand %vm681, %vm633
      %vm690 = vmand %vm682, %vm634
      %vm691 = vmand %vm683, %vm635
      %vm692 = vmand %vm684, %vm636
      %vm693 = vmand %vm685, %vm637
      %vm694 = vmand %vm686, %vm638
      %v695 = vsel %vm687, 1, 0
      %v696 = vsel %vm688, 1, 0
      %v697 = vsel %vm689, 1, 0
      %v698 = vsel %vm690, 1, 0
      %v699 = vsel %vm691, 1, 0
      %v700 = vsel %vm692, 1, 0
      %v701 = vsel %vm693, 1, 0
      %v702 = vsel %vm694, 1, 0
      %v703 = vcvt.s32.f32 %v695
      %v704 = vcvt.s32.f32 %v696
      %v705 = vcvt.s32.f32 %v697
      %v706 = vcvt.s32.f32 %v698
      %v707 = vcvt.s32.f32 %v699
      %v708 = vcvt.s32.f32 %v700
      %v709 = vcvt.s32.f32 %v701
      %v710 = vcvt.s32.f32 %v702
      %v719 = vcombine.low %v703, %v704
      %v720 = vcombine.low %v705, %v706
      %v721 = vcombine.low %v707, %v708
      %v722 = vcombine.low %v709, %v710
      %v727 = vpack.c.bf16 %v720, %v719
      %v728 = vpack.c.bf16 %v722, %v721
      %v729 = vld [vmem:[%s4] sm:$0x7]
      %731 = vset.pattern.permute.xlu0 0
      %732 = vperm.xlu0 %731, %v332
      %v733 = vpop.permute.xlu0 %732
      %736 = vset.pattern.permute.xlu0 0
      %737 = vperm.xlu0 %736, %v333
      %v738 = vpop.permute.xlu0 %737
      %v740 = vlaneseq
      %v741 = vshrl.u32 %v740, 7
      %v742 = vsub.s32 0, %v741
      %v743 = vrot.slane %v729, %v742
      %v744 = vmul.f32 %v733, %v743
      %v745 = vmul.f32 %v738, %v743
      %746 = vset.pattern.permute.xlu0 1
      %747 = vperm.xlu0 %746, %v332
      %v748 = vpop.permute.xlu0 %747
      %750 = vset.pattern.permute.xlu0 1
      %751 = vperm.xlu0 %750, %v333
      %v752 = vpop.permute.xlu0 %751
      %v754 = vlaneseq
      %v755 = vshrl.u32 %v754, 7
      %v756 = vsub.s32 1, %v755
      %v757 = vrot.slane %v729, %v756
      %v758 = vmul.f32 %v748, %v757
      %v759 = vmul.f32 %v752, %v757
      %v760 = vadd.f32 %v744, %v758
      %v761 = vadd.f32 %v745, %v759
      %762 = vset.pattern.permute.xlu0 2
      %763 = vperm.xlu0 %762, %v332
      %v764 = vpop.permute.xlu0 %763
      %766 = vset.pattern.permute.xlu0 2
      %767 = vperm.xlu0 %766, %v333
      %v768 = vpop.permute.xlu0 %767
      %v770 = vlaneseq
      %v771 = vshrl.u32 %v770, 7
      %v772 = vsub.s32 2, %v771
      %v773 = vrot.slane %v729, %v772
      %v774 = vmul.f32 %v764, %v773
      %v775 = vmul.f32 %v768, %v773
      %v776 = vadd.f32 %v760, %v774
      %v777 = vadd.f32 %v761, %v775
      %v778 = vld [vmem:[%s5] sm:$0x7]
      %780 = vset.pattern.permute.xlu0 0
      %781 = vperm.xlu0 %780, %v331
      %v782 = vpop.permute.xlu0 %781
      %v784 = vlaneseq
      %v785 = vshrl.u32 %v784, 7
      %v786 = vsub.s32 0, %v785
      %v787 = vrot.slane %v778, %v786
      %v788 = vmul.f32 %v782, %v787
      %789 = vset.pattern.permute.xlu0 1
      %790 = vperm.xlu0 %789, %v331
      %v791 = vpop.permute.xlu0 %790
      %v793 = vlaneseq
      %v794 = vshrl.u32 %v793, 7
      %v795 = vsub.s32 1, %v794
      %v796 = vrot.slane %v778, %v795
      %v797 = vmul.f32 %v791, %v796
      %v798 = vadd.f32 %v788, %v797
      %799 = vset.pattern.permute.xlu0 2
      %800 = vperm.xlu0 %799, %v331
      %v801 = vpop.permute.xlu0 %800
      %v803 = vlaneseq
      %v804 = vshrl.u32 %v803, 7
      %v805 = vsub.s32 2, %v804
      %v806 = vrot.slane %v778, %v805
      %v807 = vmul.f32 %v801, %v806
      %v808 = vadd.f32 %v798, %v807
      %v809 = vld [vmem:[%s6] sm:$0x1]
      %v811 = vlaneseq
      %v812 = vshrl.u32 %v811, 7
      %v813 = vsub.s32 0, %v812
      %v814 = vrot.slane %v809, %v813
      %v816 = vadd.f32 %v808, %v814
      %v817 = vpack.c.bf16 %v777, %v776
      %v819 = vsel %vm374, %v727, 0
      %v822 = vsel %vm374, %v728, 0
      %824 = vmatprep.subr.bf16.mxu0 0
      %825 = vmatpush1.bf16.msra.mxu0 0
      %826 = vmatprep.subr.bf16.mxu0 0
      %827 = vmatpush1.bf16.msra.mxu0 0
      %828 = vmatprep.subr.bf16.mxu0 0
      %829 = vmatpush1.bf16.msra.mxu0 0
      %830 = vmatprep.subr.bf16.mxu0 0
      %831 = vmatpush1.bf16.msra.mxu0 0
      %832 = vmatprep.subr.bf16.mxu0 0
      %833 = vmatpush1.bf16.msra.mxu0 0
      %834 = vmatprep.subr.bf16.mxu0 0
      %835 = vmatpush1.bf16.msra.mxu0 0
      %836 = vmatprep.subr.bf16.mxu0 0
      %837 = vmatpush1.bf16.msra.mxu0 0
      %838 = vmatprep.subr.bf16.mxu0 0
      %839 = vmatpush1.bf16.msra.mxu0 %v817
      %840 = vmatprep.subr.bf16.mxu0 0
      %841 = vmatpush2.bf16.msra.mxu0 0
      %842 = vmatprep.subr.bf16.mxu0 0
      %843 = vmatpush2.bf16.msra.mxu0 0
      %844 = vmatprep.subr.bf16.mxu0 0
      %845 = vmatpush2.bf16.msra.mxu0 0
      %846 = vmatprep.subr.bf16.mxu0 0
      %847 = vmatpush2.bf16.msra.mxu0 0
      %848 = vmatprep.subr.bf16.mxu0 0
      %849 = vmatpush2.bf16.msra.mxu0 0
      %850 = vmatprep.subr.bf16.mxu0 0
      %851 = vmatpush2.bf16.msra.mxu0 0
      %852 = vmatprep.subr.bf16.mxu0 0
      %853 = vmatpush2.bf16.msra.mxu0 0
      %854 = vmatprep.subr.bf16.mxu0 0
      %855 = vmatpush2.bf16.msra.mxu0 0
      %856 = vmatprep.mubr.bf16.mxu0 0
      %857 = vmatmul.mubr.bf16.gmra.mxu0 %v819
      %v858 = vpop.f32.mrf.mxu0
      %v859 = vadd.f32 0.0, %v858
      %v860 = vpop.f32.mrf.mxu0
      %v861 = vpop.f32.mrf.mxu0
      %v862 = vadd.f32 0.0, %v861
      %v863 = vpop.f32.mrf.mxu0
      %864 = vmatprep.mubr.bf16.mxu0 0
      %865 = vmatmul.mubr.bf16.gmra.mxu0 %v822
      %v866 = vpop.f32.mrf.mxu0
      %v867 = vadd.f32 0.0, %v866
      %v868 = vpop.f32.mrf.mxu0
      %v869 = vpop.f32.mrf.mxu0
      %v870 = vadd.f32 0.0, %v869
      %v871 = vpop.f32.mrf.mxu0
      %872 = vdwg.mxu0
      %v877 = vcombine.high %v859, %v859
      %v878 = vcombine.high %v862, %v862
      %v879 = vcombine.high %v867, %v867
      %v880 = vcombine.high %v870, %v870
      %v886 = vcombine.high %v816, %v816
      %v888 = vunpack.c.l.s4 1966171168
      %v889 = vunpack.c.0.s8 %v888
      %v890 = vlaneseq
      %v891 = vshrl.u32 %v890, 7
      %v892 = vsub.s32 %v889, %v891
      %v893 = vrot.slane %v816, %v892
      %v895 = vunpack.c.l.s4 1966171168
      %v896 = vunpack.c.0.s8 %v895
      %v897 = vlaneseq
      %v898 = vshrl.u32 %v897, 7
      %v899 = vsub.s32 %v896, %v898
      %v900 = vrot.slane %v886, %v899
      %v901 = vcombine.high %v893, %v893
      %v902 = vcombine.high %v900, %v900
      %v904 = vunpack.c.l.s4 1966171168
      %v905 = vunpack.c.0.s8 %v904
      %v906 = vlaneseq
      %v907 = vshrl.u32 %v906, 7
      %v908 = vsub.s32 %v905, %v907
      %v909 = vrot.slane %v893, %v908
      %v911 = vunpack.c.l.s4 1966171168
      %v912 = vunpack.c.0.s8 %v911
      %v913 = vlaneseq
      %v914 = vshrl.u32 %v913, 7
      %v915 = vsub.s32 %v912, %v914
      %v916 = vrot.slane %v900, %v915
      %v918 = vunpack.c.l.s4 1966171168
      %v919 = vunpack.c.0.s8 %v918
      %v920 = vlaneseq
      %v921 = vshrl.u32 %v920, 7
      %v922 = vsub.s32 %v919, %v921
      %v923 = vrot.slane %v901, %v922
      %v925 = vunpack.c.l.s4 1966171168
      %v926 = vunpack.c.0.s8 %v925
      %v927 = vlaneseq
      %v928 = vshrl.u32 %v927, 7
      %v929 = vsub.s32 %v926, %v928
      %v930 = vrot.slane %v902, %v929
      %v931 = vcombine.high %v909, %v909
      %v932 = vcombine.high %v916, %v916
      %v933 = vcombine.high %v923, %v923
      %v934 = vcombine.high %v930, %v930
      %v935 = vlaneseq
      %v936 = vshrl.u32 %v935, 7
      %v937 = vsub.s32 0, %v936
      %v938 = vrot.slane %v909, %v937
      %v939 = vlaneseq
      %v940 = vshrl.u32 %v939, 7
      %v941 = vsub.s32 0, %v940
      %v942 = vrot.slane %v923, %v941
      %v943 = vlaneseq
      %v944 = vshrl.u32 %v943, 7
      %v945 = vsub.s32 0, %v944
      %v946 = vrot.slane %v931, %v945
      %v947 = vlaneseq
      %v948 = vshrl.u32 %v947, 7
      %v949 = vsub.s32 0, %v948
      %v950 = vrot.slane %v933, %v949
      %v951 = vlaneseq
      %v952 = vshrl.u32 %v951, 7
      %v953 = vsub.s32 0, %v952
      %v954 = vrot.slane %v916, %v953
      %v955 = vlaneseq
      %v956 = vshrl.u32 %v955, 7
      %v957 = vsub.s32 0, %v956
      %v958 = vrot.slane %v930, %v957
      %v959 = vlaneseq
      %v960 = vshrl.u32 %v959, 7
      %v961 = vsub.s32 0, %v960
      %v962 = vrot.slane %v932, %v961
      %v963 = vlaneseq
      %v964 = vshrl.u32 %v963, 7
      %v965 = vsub.s32 0, %v964
      %v966 = vrot.slane %v934, %v965
      %v975 = vadd.f32 %v859, %v938
      %v976 = vadd.f32 %v877, %v942
      %v977 = vadd.f32 %v862, %v946
      %v978 = vadd.f32 %v878, %v950
      %v979 = vadd.f32 %v867, %v954
      %v980 = vadd.f32 %v879, %v958
      %v981 = vadd.f32 %v870, %v962
      %v982 = vadd.f32 %v880, %v966
      %v991 = vcombine.low %v975, %v976
      %v992 = vcombine.low %v977, %v978
      %v993 = vcombine.low %v979, %v980
      %v994 = vcombine.low %v981, %v982
      %999 = vst.msk [vmem:[%s329] sm:$0xff] %vm362, %v991
      %1000 = vst.msk [vmem:[%s329 + $0x8] sm:$0xff] %vm362, %v992
      %1001 = vst.msk [vmem:[%s329 + $0x10] sm:$0xff] %vm362, %v993
      %1002 = vst.msk [vmem:[%s329 + $0x18] sm:$0xff] %vm362, %v994
      %p1003 = scmp.lt.s32.totalorder %s18, 1
      %s1004 = scalar_select %p1003, %s18, 1
      %s1005 = smul.addr %s1004, 4
      %s1006 = smul.addr %s1005, 8
      %s1007 = scalar_lea.vmem %s7, %s1006
      // Predicated region
      $region49: #{tpu_custom_call.1} parent=47 // pred_check
        %p1008 = pneg %p203
      $region50: #{tpu_custom_call.1} parent=47 // pred_check_branch
        %1010 = sbr.rel (%p1008) target = $region52
      $region51: #{tpu_custom_call.1} parent=47 // pred_region
        _
      $region52: #{tpu_custom_call.1} parent=47 // pred_fallthru
        _
    $region48: #{tpu_custom_call.1} parent=5 // pred_fallthru
      _
    %p1011 = scmp.le.s32.totalorder 2, %s13
    // Predicated region
    $region53: #{tpu_custom_call.1} parent=5 // pred_check
      %p1012 = pneg %p1011
    $region54: #{tpu_custom_call.1} parent=5 // pred_check_branch
      %1014 = sbr.rel (%p1012) target = $region56
    $region55: #{tpu_custom_call.1} parent=5 // pred_region
      %s1015 = ssub.s32 %s13, 2
      // Predicated region
      $region57: #{tpu_custom_call.1} parent=55 // pred_check
        %p1016 = pneg %p209
      $region58: #{tpu_custom_call.1} parent=55 // pred_check_branch
        %1018 = sbr.rel (%p1016) target = $region60
      $region59: #{tpu_custom_call.1} parent=55 // pred_region
        %p1019 = scmp.lt.s32.totalorder %s19, 1
        %s1020 = scalar_select %p1019, %s19, 1
        %s1021 = smul.addr %s1020, 4
        %s1022 = smul.addr %s1021, 8
        %s1023 = scalar_lea.vmem %s7, %s1022
      $region60: #{tpu_custom_call.1} parent=55 // pred_fallthru
        _
    $region56: #{tpu_custom_call.1} parent=5 // pred_fallthru
      _
  $region6: #{tpu_custom_call.1} parent=0 // loop_footer
    %s17 = sadd.s32 1, %s13
  $region7: #{tpu_custom_call.1} parent=0 // loop_footer_branch
    %12 = sbr.rel target = $region3
  $region8: #{tpu_custom_call.1} parent=0 // loop_exit
    _

</llo_original>
